<compile_context>
chip_gen: v5e
topology: v5e:2x2
jax: 0.10.0
libtpu: 0.0.40
codegen_flags: <defaults>
</compile_context>

<pallas_src>
import jax
import jax.numpy as jnp
from jax.experimental import pallas as pl
from jax.experimental.pallas import tpu as pltpu


_LANE_CANDIDATES = (1024, 512, 256, 128)   # lane-dense widths (multiples of 128)
_MIN_GRID_STEPS = 4                        # keep >= 4 steps: pipeline overlap + 2 TCs on v7x


def _prox_l1_kernel(sigma_ref, x_ref, o_ref):
    # sigma_ref: (1,) f32 scalar resident in SMEM; x_ref/o_ref: (TR, LANE) VMEM tiles.
    # Compute in f32 (free on this HBM-bound kernel) and cast back on store.
    s = sigma_ref[0]
    x = x_ref[...].astype(jnp.float32)
    y = jnp.maximum(0.0, x - s) + jnp.minimum(0.0, x + s)
    o_ref[...] = y.astype(o_ref.dtype)


def _sublane_pack(dtype):
    """Rows per packed sublane tile: 8 for 4-byte, 16 for 2-byte, 32 for 1-byte dtypes."""
    itemsize = jnp.dtype(dtype).itemsize
    return max(8, 32 // max(itemsize, 1))


def _tpu_budgets():
    """(target_tile_bytes, vmem_limit_bytes) tuned per TPU generation."""
    vmem_cap = None
    try:
        if hasattr(pltpu, "get_tpu_info"):
            info = pltpu.get_tpu_info()
            vmem_cap = getattr(info, "vmem_capacity_bytes", None)
    except Exception:
        vmem_cap = None
    if vmem_cap is not None and vmem_cap <= 64 * 1024 * 1024:
        # v7x-class: 64 MiB VMEM, fastest HBM. 4 live buffers (in x2 + out x2) of
        # 6 MiB = 24 MiB + headroom inside a 40 MiB scoped budget.
        return 6 * 1024 * 1024, 40 * 1024 * 1024
    if vmem_cap is not None:
        # v5e / v6e: 128 MiB VMEM -> 8 MiB tiles, 64 MiB budget.
        return 8 * 1024 * 1024, 64 * 1024 * 1024
    # Unknown generation (query unavailable): conservative sizes safe on every chip.
    return 4 * 1024 * 1024, 32 * 1024 * 1024


def _choose_layout(total):
    """Pick a lane-dense 2-D layout (rows, lane, remainder) for `total` elements."""
    for lane in _LANE_CANDIDATES:
        if total % lane == 0:
            return total // lane, lane, 0
    # Ragged size: largest 128-aligned prefix goes through the kernel; the tiny
    # (<128 element) remainder is handled in plain jnp (no pad+slice round trip).
    lane = 128
    rows = total // lane
    return rows, lane, total - rows * lane


def prox_l1(x, sigma):
    """Soft-thresholding: prox of sigma*||.||_1 evaluated at x (any shape, any float dtype)."""
    orig_shape = x.shape
    dtype = x.dtype
    total = x.size
    itemsize = jnp.dtype(dtype).itemsize

    sigma_f32 = jnp.asarray(sigma, dtype=jnp.float32)

    rows, lane, rem = _choose_layout(total)

    if rows == 0:
        # Fewer than 128 elements: not worth a kernel launch.
        xf = x.astype(jnp.float32)
        return (jnp.maximum(0.0, xf - sigma_f32) + jnp.minimum(0.0, xf + sigma_f32)).astype(dtype)

    flat = x.reshape(-1)
    main = flat[: rows * lane] if rem else flat
    x2d = main.reshape(rows, lane)

    target_tile_bytes, vmem_limit = _tpu_budgets()
    pack = _sublane_pack(dtype)

    # Rows per tile: as big as the per-generation budget allows ...
    tr = max(pack, (target_tile_bytes // (lane * itemsize)) // pack * pack)
    # ... but keep at least _MIN_GRID_STEPS grid steps when the array permits, so the
    # grid spans both v7x TensorCores and DMA / compute / writeback actually overlap.
    if rows >= _MIN_GRID_STEPS * pack:
        tr = min(tr, max(pack, (rows // _MIN_GRID_STEPS) // pack * pack))
    if tr >= rows:
        tr = rows  # single full-extent tile for small arrays
    grid = (pl.cdiv(rows, tr),)

    sigma_arr = sigma_f32.reshape(1)

    out2d = pl.pallas_call(
        _prox_l1_kernel,
        grid=grid,
        out_shape=jax.ShapeDtypeStruct((rows, lane), dtype),
        in_specs=[
            pl.BlockSpec(memory_space=pltpu.SMEM),         # sigma: resident SMEM scalar
            pl.BlockSpec((tr, lane), lambda i: (i, 0)),    # x tile (double-buffered)
        ],
        out_specs=pl.BlockSpec((tr, lane), lambda i: (i, 0)),
        compiler_params=pltpu.CompilerParams(
            dimension_semantics=("parallel",),             # megacore sharding on v7x, no-op v5e/v6e
            vmem_limit_bytes=vmem_limit,
        ),
        cost_estimate=pl.CostEstimate(
            flops=5 * total,
            transcendentals=0,
            bytes_accessed=2 * total * itemsize,
        ),
    )(sigma_arr, x2d)

    out_flat = out2d.reshape(-1)
    if rem:
        tail = flat[rows * lane:].astype(jnp.float32)
        tail = (jnp.maximum(0.0, tail - sigma_f32) + jnp.minimum(0.0, tail + sigma_f32)).astype(dtype)
        out_flat = jnp.concatenate([out_flat, tail])
    return out_flat.reshape(orig_shape)


if __name__ == "__main__":
    key = jax.random.PRNGKey(0)
    x = jax.random.normal(key, (2, 4, 16, 16), dtype=jnp.float32)
    sigma = 0.1

    out = prox_l1(x, sigma)
    out = jax.block_until_ready(out)

    # Reference check (plain JAX, same closed-form soft-threshold as the PyTorch module).
    ref = jnp.maximum(0.0, x - sigma) + jnp.minimum(0.0, x + sigma)
    assert out.shape == x.shape and out.dtype == x.dtype
    assert jnp.allclose(out, ref, atol=1e-6), "mismatch vs reference"

    print("KERNEL_OK")
</pallas_src>

<mosaic_0001>
module attributes {stable_mosaic.version = 11 : i64} {
  func.func @_prox_l1_kernel(%arg0: i32, %arg1: memref<1xf32, #tpu.memory_space<smem>>, %arg2: memref<2x1024xf32, #tpu.memory_space<vmem>>, %arg3: memref<2x1024xf32, #tpu.memory_space<vmem>>) attributes {dimension_semantics = [#tpu.dimension_semantics<parallel>], iteration_bounds = array<i64: 1>, scalar_prefetch = 0 : i64, scratch_operands = 0 : i64, tpu.core_type = #tpu.core_type<tc>, window_params = [{transform_indices = @transform_0, window_bounds = array<i64: 1>}, {transform_indices = @transform_1, window_bounds = array<i64: 2, 1024>}, {transform_indices = @transform_2, window_bounds = array<i64: 2, 1024>}]} {
    %c0 = arith.constant 0 : index
    %0 = memref.load %arg1[%c0] : memref<1xf32, #tpu.memory_space<smem>>
    %c0_0 = arith.constant 0 : index
    %c0_1 = arith.constant 0 : index
    %1 = vector.load %arg2[%c0_0, %c0_1] : memref<2x1024xf32, #tpu.memory_space<vmem>>, vector<2x1024xf32>
    %2 = vector.broadcast %0 : f32 to vector<2x1024xf32>
    %3 = arith.subf %1, %2 : vector<2x1024xf32>
    %cst = arith.constant 0.000000e+00 : f32
    %4 = vector.broadcast %cst : f32 to vector<2x1024xf32>
    %5 = arith.maximumf %4, %3 : vector<2x1024xf32>
    %6 = vector.broadcast %0 : f32 to vector<2x1024xf32>
    %7 = arith.addf %1, %6 : vector<2x1024xf32>
    %cst_2 = arith.constant 0.000000e+00 : f32
    %8 = vector.broadcast %cst_2 : f32 to vector<2x1024xf32>
    %9 = arith.minimumf %8, %7 : vector<2x1024xf32>
    %10 = arith.addf %5, %9 : vector<2x1024xf32>
    %c0_3 = arith.constant 0 : index
    %c0_4 = arith.constant 0 : index
    %11 = vector.load %arg3[%c0_3, %c0_4] : memref<2x1024xf32, #tpu.memory_space<vmem>>, vector<2x1024xf32>
    tpu.vector_store %arg3[%c0_3, %c0_4], %10 {strides = array<i32>} : memref<2x1024xf32, #tpu.memory_space<vmem>>, vector<2x1024xf32>,
    return
  }
  func.func @transform_0(%arg0: i32) -> i32 {
    %c0_i32 = arith.constant 0 : i32
    %c0_i32_0 = arith.constant 0 : i32
    return %c0_i32 : i32
  }
  func.func @transform_1(%arg0: i32) -> (i32, i32) {
    %c0_i32 = arith.constant 0 : i32
    %c0_i32_0 = arith.constant 0 : i32
    return %arg0, %c0_i32 : i32, i32
  }
  func.func @transform_2(%arg0: i32) -> (i32, i32) {
    %c0_i32 = arith.constant 0 : i32
    %c0_i32_0 = arith.constant 0 : i32
    return %arg0, %c0_i32 : i32, i32
  }
}

</mosaic_0001>

<llo_original>
// kernel: tpu_custom_call.1
$region0: #{tpu_custom_call.1}
  #allocation0 [shape = 'u32[]', space=smem, size = 0x4, offset = 0x4, fixed_abs, tag = 'smem constant byte address 0x4 - core index']
  #allocation1 [shape = 'u32[72,128]{1,0:T(1,128)}', space=vmem, size = 0x9000, scoped, tag = 'internal scratch']
  #allocation2 [shape = 'f32[1]{0:T(128)S(6)}', space=smem, size = 0x200, scoped, tag = 'scoped memory for tpu_custom_call.1']
  %s0 = inlined_call_operand.<no memory space> [shape: f32[1], index: 0, kind: input, shape index: {}]
  %s1 = inlined_call_operand.hbm [shape: f32[2,1024], index: 1, kind: input, shape index: {}]
  %s2 = inlined_call_operand.hbm [shape: f32[2,1024], index: 2, kind: output, shape index: {}]
  %s3 = sld [smem:[#allocation0]]
  $region22: #{tpu_custom_call.1} parent=0
    _
  %s5 = ssub.s32 1, %s3
  %s6 = scalar_select 0, %s5, %s3
  %7 = sst [smem:[#allocation2]] %s0
  $region1: #{tpu_custom_call.1} parent=0
    #allocation3 [shape = 'u8[8192]{0}', space=vmem, size = 0x2000, scoped, tag = 'input window, operand 1, single buffered']
    #allocation4 [shape = 's32[1]{0}', space=sflag, size = 0x4, scoped, tag = 'scoped memory for tpu_custom_call.1']
    #allocation5 [shape = 's32[1]{0}', space=sflag, size = 0x4, scoped, tag = 'scoped memory for tpu_custom_call.1']
    #allocation6 [shape = 'u8[8192]{0}', space=vmem, size = 0x2000, scoped, tag = 'output window, operand 0, single buffered']
    %8 = vsyncpa [#allocation4], 0
    %9 = vsyncpa [#allocation5], 0
    // Predicated region
    $region2: #{tpu_custom_call.1} parent=1 // pred_check
      _
    $region3: #{tpu_custom_call.1} parent=1 // pred_check_branch
      %11 = sbr.rel (0) target = $region5
    $region4: #{tpu_custom_call.1} parent=1 // pred_region
      _
    $region5: #{tpu_custom_call.1} parent=1 // pred_fallthru
      _
    // Predicated region
    $region6: #{tpu_custom_call.1} parent=1 // pred_check
      _
    $region7: #{tpu_custom_call.1} parent=1 // pred_check_branch
      %13 = sbr.rel (0) target = $region9
    $region8: #{tpu_custom_call.1} parent=1 // pred_region
      %15 = vsyncadd [#allocation4], 0
      %s17 = sshll.u32 %s1, 4
      %s18 = int_to_ptr.hbm [resolvable:$true] %s17
      %s19 = sshll.u32 [#allocation3], 4
      %s20 = int_to_ptr.vmem [resolvable:$true] %s19
      %22 = dma.hbm_to_vmem [thread:$0]  %s18, 256, %s20, [#allocation4]
    $region9: #{tpu_custom_call.1} parent=1 // pred_fallthru
      _
    // Predicated region
    $region10: #{tpu_custom_call.1} parent=1 // pred_check
      _
    $region11: #{tpu_custom_call.1} parent=1 // pred_check_branch
      %24 = sbr.rel (0) target = $region13
    $region12: #{tpu_custom_call.1} parent=1 // pred_region
      %26 = dma.done [#allocation4], 256
    $region13: #{tpu_custom_call.1} parent=1 // pred_fallthru
      _
    %s27 = sld [smem:[#allocation2]]
    %v28 = vld [vmem:[#allocation3] sm:$0xff]
    %v29 = vld [vmem:[#allocation3 + $0x8] sm:$0xff]
    %v30 = vstv %s27
    %v31 = vsub.f32 %v28, %v30
    %v32 = vsub.f32 %v29, %v30
    %v33 = vmax.f32 %v31, 0.0
    %v34 = vmax.f32 %v32, 0.0
    %v35 = vadd.f32 %v28, %v30
    %v36 = vadd.f32 %v29, %v30
    %v37 = vmin.f32 %v35, 0.0
    %v38 = vmin.f32 %v36, 0.0
    %v39 = vadd.f32 %v33, %v37
    %v40 = vadd.f32 %v34, %v38
    %41 = vst [vmem:[#allocation6] sm:$0xff] %v39
    %42 = vst [vmem:[#allocation6 + $0x8] sm:$0xff] %v40
    // Predicated region
    $region14: #{tpu_custom_call.1} parent=1 // pred_check
      _
    $region15: #{tpu_custom_call.1} parent=1 // pred_check_branch
      %44 = sbr.rel (0) target = $region17
    $region16: #{tpu_custom_call.1} parent=1 // pred_region
      %46 = vsyncadd [#allocation5], 0
      %s48 = sshll.u32 [#allocation6], 4
      %s49 = int_to_ptr.vmem [resolvable:$true] %s48
      %s50 = sshll.u32 %s2, 4
      %s51 = int_to_ptr.hbm [resolvable:$true] %s50
      %53 = dma.vmem_to_hbm [thread:$0]  %s49, 256, %s51, [#allocation5]
    $region17: #{tpu_custom_call.1} parent=1 // pred_fallthru
      _
    // Predicated region
    $region18: #{tpu_custom_call.1} parent=1 // pred_check
      _
    $region19: #{tpu_custom_call.1} parent=1 // pred_check_branch
      %55 = sbr.rel (0) target = $region21
    $region20: #{tpu_custom_call.1} parent=1 // pred_region
      %57 = dma.done [#allocation5], 256
    $region21: #{tpu_custom_call.1} parent=1 // pred_fallthru
      _
    %58 = vsyncpa [#allocation4], 1
    %59 = vsyncpa [#allocation5], 1

</llo_original>
